<compile_context>
chip_gen: v7x
topology: tpu7x:2x2x1
jax: 0.10.0
libtpu: 0.0.40
codegen_flags: <defaults>
</compile_context>

<pallas_src>
import functools

import jax
import jax.numpy as jnp
from jax import lax
from jax.experimental import pallas as pl
from jax.experimental.pallas import tpu as pltpu

G = 9.8
MANNING_COEFF_FLOODPLAIN = 0.05
_EPSILON = 1e-08
_MINIMUM_FLOW = 1e-07

_SUBLANE = 8
_LANE = 128
_F32 = jnp.float32


def _round_up(x: int, m: int) -> int:
    return ((x + m - 1) // m) * m


def _tpu_limits():
    """(physical VMEM bytes, TensorCores per chip) with conservative fallbacks."""
    vmem_bytes = 128 * 1024 * 1024
    cores = 1
    try:
        info = pltpu.get_tpu_info()
        vmem_bytes = int(getattr(info, "vmem_capacity_bytes", vmem_bytes))
        for name in ("tensorcores_per_chip", "num_tensorcores", "num_cores",
                     "core_count"):
            v = getattr(info, name, None)
            if v:
                cores = int(v)
                break
    except Exception:
        pass
    return vmem_bytes, cores


def _pick_batch_block(n, slab_elems, vmem_budget_bytes, cores):
    """Number of batch slabs packed per grid step.

    Targets ~256K+ elements per step (amortizes the ~0.35us/step pipeline
    overhead), keeps >= 2 grid steps per TensorCore on multi-core chips, and
    stays inside the scoped-VMEM budget (7 I/O slabs double-buffered per packed
    slab + ~22 live f32 intermediates for the one slab being processed).
    """
    slab_bytes = slab_elems * 4

    def fits(b):
        return (7 * 2 * b + 22) * slab_bytes <= vmem_budget_bytes

    b_pack = max(1, -(-(256 * 1024) // slab_elems))           # packing target
    b_cores = n if cores <= 1 else max(1, n // (2 * cores))    # keep all TCs busy
    b_target = max(1, min(n, b_pack, b_cores))
    while b_target > 1 and not fits(b_target):
        b_target -= 1

    best = 1
    for d in range(1, b_target + 1):   # largest divisor of n (may fall back to 1)
        if n % d == 0:
            best = d

    if not fits(best):
        # TODO(synk): H-tiled grid with a one-row halo for slabs that exceed
        # VMEM (needed for very large single domains, esp. v7x's 64 MiB VMEM).
        raise NotImplementedError(
            "SaintVenantFlux: a single padded slab (%d elements, %d B working "
            "set) does not fit the VMEM budget (%d B); H-tiling with a halo is "
            "not implemented." % (slab_elems, (14 + 22) * slab_bytes,
                                  vmem_budget_bytes))
    return best


def _saint_venant_kernel(dt_ref, z_ref, h_ref, qx_ref, qy_ref,
                         h_out_ref, qx_out_ref, qy_out_ref,
                         *, inv_dx, n_rows, n_cols):
    """One Saint-Venant time step on a block of (8,128)-aligned slabs.

    Ref shapes: (b_blk, hp, wp), hp % 8 == 0, wp % 128 == 0.
    Logical domain: rows [0, n_rows), cols [0, n_cols); the rest is zero pad.
      qx: x-interface fluxes at cols [0, n_cols-1); zero elsewhere.
      qy: y-interface fluxes at rows [0, n_rows-1); zero elsewhere.
    The zero pad + edge masks implement the closed zero-flux boundary; because
    the masked outputs stay exactly zero, padded state can be stepped in place
    (input_output_aliases) for arbitrarily many steps.
    """
    b_blk, hp, wp = z_ref.shape
    dt = dt_ref[0]
    # Hoisted scalar products (splat once into the vector expressions).
    g_dt_inv_dx = (G * inv_dx) * dt                        # folds 1/dx into slope
    g_dt_man2 = (G * (MANNING_COEFF_FLOODPLAIN ** 2)) * dt
    dt_inv_dx = dt * inv_dx

    # Edge masks: computed once per grid step, reused for every packed slab.
    col = lax.broadcasted_iota(jnp.int32, (hp, wp), 1)
    row = lax.broadcasted_iota(jnp.int32, (hp, wp), 0)
    x_interface = col < (n_cols - 1)   # columns carrying a real x-flux
    y_interface = row < (n_rows - 1)   # rows carrying a real y-flux

    # Neighbour access via XLU rotations (jnp.roll convention:
    # out[i] = in[(i - shift) % size]).  Wrap-around only ever lands on zero
    # pad or on interfaces that are masked off below.
    def next_col(a):   # a[:, w] -> a[:, (w + 1) % wp]
        return pltpu.roll(a, wp - 1, 1)

    def prev_col(a):   # a[:, w] -> a[:, (w - 1) % wp]
        return pltpu.roll(a, 1, 1)

    def next_row(a):   # a[r, :] -> a[(r + 1) % hp, :]
        return pltpu.roll(a, hp - 1, 0)

    def prev_row(a):   # a[r, :] -> a[(r - 1) % hp, :]
        return pltpu.roll(a, 1, 0)

    def refined_recip(x):
        # EUP approximate reciprocal + one Newton step (x >= 1, well conditioned).
        r = pl.reciprocal(x, approx=True)
        return r * (2.0 - x * r)

    def step_one_slab(ib):
        z = z_ref[ib]
        h = h_ref[ib]
        qx = qx_ref[ib]
        qy = qy_ref[ib]

        wl = h + z  # water level

        # Cross flows on x-interfaces (valid at cols < n_cols-1).
        wl_e = next_col(wl)
        z_e = next_col(z)
        cfx = jnp.maximum(jnp.maximum(wl_e, wl) - jnp.maximum(z_e, z),
                          _MINIMUM_FLOW)

        # Cross flows on y-interfaces (valid at rows < n_rows-1).
        wl_s = next_row(wl)
        z_s = next_row(z)
        cfy = jnp.maximum(jnp.maximum(wl_s, wl) - jnp.maximum(z_s, z),
                          _MINIMUM_FLOW)

        # Factored 2x2 (0.25) averages of the transverse flux; the zero pad
        # column/row of qx/qy plays the role of the conv zero padding.
        row_sum = qy + next_col(qy)                    # qy[r,c] + qy[r,c+1]
        y_avg = 0.25 * (row_sum + prev_row(row_sum))   # + qy[r-1,c] + qy[r-1,c+1]
        q_norm_x = jnp.sqrt(qx * qx + y_avg * y_avg + _EPSILON)

        col_sum = qx + next_row(qx)                    # qx[r,c] + qx[r+1,c]
        x_avg = 0.25 * (col_sum + prev_col(col_sum))   # + qx[r,c-1] + qx[r+1,c-1]
        q_norm_y = jnp.sqrt(qy * qy + x_avg * x_avg + _EPSILON)

        # Flux update (theta = 1 -> previous flux == q).  cf**(-7/3) via
        # exp/log (EUP); 1/dx folded into the G*dt scalar saves 2 mul/elem.
        inv_cfx_73 = jnp.exp(jnp.log(cfx) * (-7.0 / 3.0))
        inv_cfy_73 = jnp.exp(jnp.log(cfy) * (-7.0 / 3.0))
        num_x = qx - g_dt_inv_dx * cfx * (wl_e - wl)
        num_y = qy - g_dt_inv_dx * cfy * (wl_s - wl)
        den_x = 1.0 + g_dt_man2 * q_norm_x * inv_cfx_73   # >= 1
        den_y = 1.0 + g_dt_man2 * q_norm_y * inv_cfy_73   # >= 1

        # Closed zero-flux boundary: masked / pad interfaces stay exactly zero.
        qx_next = jnp.where(x_interface, num_x * refined_recip(den_x), 0.0)
        qy_next = jnp.where(y_interface, num_y * refined_recip(den_y), 0.0)

        # Mass conservation:
        # h_{n+1}[r,c] = h + dt/dx*(qx[r,c-1]-qx[r,c] + qy[r-1,c]-qy[r,c]);
        # out-of-domain fluxes are exactly the zeroed entries (delta_h = 0).
        div = (prev_col(qx_next) - qx_next) + (prev_row(qy_next) - qy_next)

        h_out_ref[ib] = h + dt_inv_dx * div
        qx_out_ref[ib] = qx_next
        qy_out_ref[ib] = qy_next

    if b_blk == 1:
        step_one_slab(0)
    else:
        # fori_loop (not an unrolled Python for) bounds per-slab live ranges so
        # packing several batch slabs per grid step does not blow vreg pressure.
        def loop_body(ib, carry):
            step_one_slab(ib)
            return carry

        lax.fori_loop(0, b_blk, loop_body, 0)


class SaintVenantFlux:
    """JAX/Pallas port of the PyTorch SaintVenantFlux module (theta = 1).

    Two usage modes:
      * __call__(z, h, qx, qy, dt): torch-module-shaped API (pads + slices
        around a single kernel step).
      * pad_state / step_padded / unpad_state: keep the simulation state in the
        padded (N, hp, wp) layout across many time steps (pad once, slice once)
        -- the HBM-bandwidth-efficient path.  The kernel outputs alias their
        input slabs (input_output_aliases), so jitting the whole stepping loop
        updates the state buffers in place.
    """

    def __init__(self, spatial_samples_number: int, spatial_delta: float,
                 theta: float = 1.0):
        assert theta == 1.0, "only the default theta=1 branch is implemented"
        self.n_x = spatial_samples_number
        self.dx = float(spatial_delta)
        self.theta = theta
        # Deterministic "parameters" mirroring the torch module __init__ (kept
        # for documentation; their values are folded into the kernel).
        self.q_centered_weights = jnp.array(
            [(1 - theta) / 2, theta, (1 - theta) / 2],
            _F32).reshape(1, 1, 1, 3)
        self.derivative_weights = jnp.array(
            [-1.0 / spatial_delta, 1.0 / spatial_delta],
            _F32).reshape(1, 1, 1, 2)
        self.average_weights = jnp.full((1, 1, 2, 2), 0.25, _F32)
        self.minimum_flow = jnp.float32(_MINIMUM_FLOW)
        self._step_cache = {}

    # ---- padded-state API --------------------------------------------------
    def pad_state(self, z_n, h_n, q_x_n, q_y_n):
        """Pad all fields once to a common (8,128)-aligned (N, hp, wp) slab."""
        N, C, H, W = z_n.shape
        assert C == 1
        assert h_n.shape == (N, C, H, W)
        assert q_x_n.shape == (N, C, H, W - 1)
        assert q_y_n.shape == (N, C, H - 1, W)
        hp = _round_up(H, _SUBLANE)
        wp = _round_up(W, _LANE)

        def pad_to(a, rows, cols):
            return jnp.pad(a.astype(_F32).reshape(N, rows, cols),
                           ((0, 0), (0, hp - rows), (0, wp - cols)))

        return (pad_to(z_n, H, W), pad_to(h_n, H, W),
                pad_to(q_x_n, H, W - 1), pad_to(q_y_n, H - 1, W))

    def step_padded(self, z_p, h_p, qx_p, qy_p, dt, *, domain_shape):
        """One Saint-Venant step on padded state; returns new (h, qx, qy) slabs."""
        H, W = domain_shape
        N = z_p.shape[0]
        step = self._get_step_fn(N, H, W)
        return step(z_p, h_p, qx_p, qy_p, jnp.asarray(dt, _F32))

    def unpad_state(self, h_p, qx_p, qy_p, shape):
        N, C, H, W = shape
        return (h_p[:, :H, :W].reshape(N, C, H, W),
                qx_p[:, :H, :W - 1].reshape(N, C, H, W - 1),
                qy_p[:, :H - 1, :W].reshape(N, C, H - 1, W))

    # ---- torch-module-shaped API --------------------------------------------
    def __call__(self, z_n, h_n, q_x_n, q_y_n, dt):
        N, C, H, W = z_n.shape
        z_p, h_p, qx_p, qy_p = self.pad_state(z_n, h_n, q_x_n, q_y_n)
        h_p, qx_p, qy_p = self.step_padded(z_p, h_p, qx_p, qy_p, dt,
                                           domain_shape=(H, W))
        return self.unpad_state(h_p, qx_p, qy_p, (N, C, H, W))

    # ---- kernel construction -------------------------------------------------
    def _get_step_fn(self, N, H, W):
        key = (int(N), int(H), int(W))
        fn = self._step_cache.get(key)
        if fn is None:
            fn = self._build_step_fn(*key)
            self._step_cache[key] = fn
        return fn

    def _build_step_fn(self, N, H, W):
        hp = _round_up(H, _SUBLANE)
        wp = _round_up(W, _LANE)
        slab_elems = hp * wp
        slab_bytes = slab_elems * 4

        vmem_cap, cores = _tpu_limits()
        # Usable scoped-VMEM ceiling: ~48 MiB on v7x (64 MiB physical per core),
        # ~96 MiB on v5e/v6e (128 MiB physical).
        vmem_ceiling = min(96 * 1024 * 1024, int(0.75 * vmem_cap))
        b_blk = _pick_batch_block(N, slab_elems, int(0.8 * vmem_ceiling), cores)
        working_set = (7 * 2 * b_blk + 22) * slab_bytes
        vmem_limit = int(min(vmem_ceiling,
                             max(32 * 1024 * 1024, 2 * working_set)))

        kernel = functools.partial(_saint_venant_kernel, inv_dx=1.0 / self.dx,
                                   n_rows=H, n_cols=W)
        slab_spec = pl.BlockSpec((b_blk, hp, wp), lambda i: (i, 0, 0))
        slab_shape = jax.ShapeDtypeStruct((N, hp, wp), _F32)

        call = pl.pallas_call(
            kernel,
            grid=(N // b_blk,),
            in_specs=[
                pl.BlockSpec(memory_space=pltpu.MemorySpace.SMEM),  # dt scalar
                slab_spec,   # z
                slab_spec,   # h
                slab_spec,   # q_x (padded to the common slab)
                slab_spec,   # q_y (padded to the common slab)
            ],
            out_specs=[slab_spec, slab_spec, slab_spec],
            out_shape=(slab_shape, slab_shape, slab_shape),
            # h / q_x / q_y outputs overwrite their input slabs; z is read-only.
            input_output_aliases={2: 0, 3: 1, 4: 2},
            compiler_params=pltpu.CompilerParams(
                dimension_semantics=("parallel",),
                vmem_limit_bytes=vmem_limit),
        )

        def step(z_p, h_p, qx_p, qy_p, dt):
            dt_arr = dt.astype(_F32).reshape(1)
            return call(dt_arr, z_p, h_p, qx_p, qy_p)

        return jax.jit(step)


def saint_venant_ref(z, h, qx, qy, dt, dx):
    """Pure-JAX reference (same math as the torch forward, theta=1, closed BC)."""
    wl = h + z
    cfx = jnp.maximum(jnp.maximum(wl[..., 1:], wl[..., :-1])
                      - jnp.maximum(z[..., 1:], z[..., :-1]), _MINIMUM_FLOW)
    cfy = jnp.maximum(jnp.maximum(wl[..., 1:, :], wl[..., :-1, :])
                      - jnp.maximum(z[..., 1:, :], z[..., :-1, :]), _MINIMUM_FLOW)
    slope_x = (wl[..., 1:] - wl[..., :-1]) / dx
    slope_y = (wl[..., 1:, :] - wl[..., :-1, :]) / dx
    qy_pad = jnp.pad(qy, ((0, 0), (0, 0), (1, 1), (0, 0)))
    y_avg = 0.25 * (qy_pad[..., :-1, :-1] + qy_pad[..., :-1, 1:]
                    + qy_pad[..., 1:, :-1] + qy_pad[..., 1:, 1:])
    qx_pad = jnp.pad(qx, ((0, 0), (0, 0), (0, 0), (1, 1)))
    x_avg = 0.25 * (qx_pad[..., :-1, :-1] + qx_pad[..., :-1, 1:]
                    + qx_pad[..., 1:, :-1] + qx_pad[..., 1:, 1:])
    qnx = jnp.sqrt(qx * qx + y_avg * y_avg + _EPSILON)
    qny = jnp.sqrt(qy * qy + x_avg * x_avg + _EPSILON)
    num_x = qx - G * dt * cfx * slope_x
    num_y = qy - G * dt * cfy * slope_y
    man2 = MANNING_COEFF_FLOODPLAIN ** 2
    den_x = 1.0 + G * dt * man2 * qnx / cfx ** (7.0 / 3.0)
    den_y = 1.0 + G * dt * man2 * qny / cfy ** (7.0 / 3.0)
    qxn = num_x / den_x
    qyn = num_y / den_y
    qx_bc = jnp.pad(qxn, ((0, 0), (0, 0), (0, 0), (1, 1)))
    qy_bc = jnp.pad(qyn, ((0, 0), (0, 0), (1, 1), (0, 0)))
    div = ((qx_bc[..., :-1] - qx_bc[..., 1:])
           + (qy_bc[..., :-1, :] - qy_bc[..., 1:, :])) / dx
    return h + dt * div, qxn, qyn


def _make_inputs(key, N, C, H, W):
    k1, k2, k3, k4 = jax.random.split(key, 4)
    z_n = 0.1 * jax.random.normal(k1, (N, C, H, W), _F32)          # stream bed
    h_n = 1.0 + jax.random.uniform(k2, (N, C, H, W), dtype=_F32)   # water height
    q_x_n = 0.1 * jax.random.normal(k3, (N, C, H, W - 1), _F32)    # x-flux
    q_y_n = 0.1 * jax.random.normal(k4, (N, C, H - 1, W), _F32)    # y-flux
    return z_n, h_n, q_x_n, q_y_n


def _check(name, got, want, rtol, atol):
    assert got.shape == want.shape, (name, got.shape, want.shape)
    assert jnp.allclose(got, want, rtol=rtol, atol=atol), name + " mismatch"


def _run_single_step_case(key, N, C, H, W, dx, dt_val):
    z_n, h_n, q_x_n, q_y_n = _make_inputs(key, N, C, H, W)
    dt = jnp.float32(dt_val)
    model = SaintVenantFlux(spatial_samples_number=W, spatial_delta=dx)
    h_next, qx_next, qy_next = model(z_n, h_n, q_x_n, q_y_n, dt)
    jax.block_until_ready((h_next, qx_next, qy_next))
    h_ref, qx_ref, qy_ref = saint_venant_ref(z_n, h_n, q_x_n, q_y_n, dt, dx)
    _check("h", h_next, h_ref, 2e-3, 2e-4)
    _check("q_x", qx_next, qx_ref, 2e-3, 2e-4)
    _check("q_y", qy_next, qy_ref, 2e-3, 2e-4)


def _run_multi_step_case(key, N, C, H, W, dx, dt_val, n_steps):
    """Persistent padded-state path: pad once, step n times, slice once.
    H % 8 == 0 and W % 128 == 0 here (locks in the exact-multiple boundary
    invariant); a dry (h = 0) patch exercises the minimum_flow clamp."""
    z_n, h_n, q_x_n, q_y_n = _make_inputs(key, N, C, H, W)
    h_n = h_n.at[:, :, 2:6, 3:9].set(0.0)     # dry cells
    dt = jnp.float32(dt_val)
    model = SaintVenantFlux(spatial_samples_number=W, spatial_delta=dx)

    z_p, h_p, qx_p, qy_p = model.pad_state(z_n, h_n, q_x_n, q_y_n)
    for _ in range(n_steps):
        h_p, qx_p, qy_p = model.step_padded(z_p, h_p, qx_p, qy_p, dt,
                                            domain_shape=(H, W))
    h_next, qx_next, qy_next = model.unpad_state(h_p, qx_p, qy_p, (N, C, H, W))
    jax.block_until_ready((h_next, qx_next, qy_next))

    h_r, qx_r, qy_r = h_n, q_x_n, q_y_n
    for _ in range(n_steps):
        h_r, qx_r, qy_r = saint_venant_ref(z_n, h_r, qx_r, qy_r, dt, dx)
    _check("h (multi-step)", h_next, h_r, 3e-3, 3e-4)
    _check("q_x (multi-step)", qx_next, qx_r, 3e-3, 3e-4)
    _check("q_y (multi-step)", qy_next, qy_r, 3e-3, 3e-4)


if __name__ == "__main__":
    key = jax.random.PRNGKey(0)
    k_a, k_b = jax.random.split(key)
    # Small non-square, lane/sublane-unaligned case (W=24 -> padded to 128);
    # single step through the torch-shaped __call__ API.
    _run_single_step_case(k_a, N=2, C=1, H=16, W=24, dx=1.0, dt_val=0.05)
    # Exact-multiple case (H % 8 == 0, W % 128 == 0 -> zero lane/sublane pad):
    # multi-step persistent padded state + in-place aliasing + dry cells.
    _run_multi_step_case(k_b, N=4, C=1, H=16, W=128, dx=2.0, dt_val=0.1,
                         n_steps=3)
    print("KERNEL_OK")
</pallas_src>

<mosaic_0001>
module attributes {stable_mosaic.version = 11 : i64} {
  func.func @_saint_venant_kernel(%arg0: i32, %arg1: memref<1xf32, #tpu.memory_space<smem>>, %arg2: memref<2x16x128xf32, #tpu.memory_space<vmem>>, %arg3: memref<2x16x128xf32, #tpu.memory_space<vmem>>, %arg4: memref<2x16x128xf32, #tpu.memory_space<vmem>>, %arg5: memref<2x16x128xf32, #tpu.memory_space<vmem>>, %arg6: memref<2x16x128xf32, #tpu.memory_space<vmem>>, %arg7: memref<2x16x128xf32, #tpu.memory_space<vmem>>, %arg8: memref<2x16x128xf32, #tpu.memory_space<vmem>>) attributes {dimension_semantics = [#tpu.dimension_semantics<parallel>], iteration_bounds = array<i64: 1>, scalar_prefetch = 0 : i64, scratch_operands = 0 : i64, tpu.core_type = #tpu.core_type<tc>, window_params = [{transform_indices = @transform_0, window_bounds = array<i64: 1>}, {transform_indices = @transform_1, window_bounds = array<i64: 2, 16, 128>}, {transform_indices = @transform_2, window_bounds = array<i64: 2, 16, 128>}, {transform_indices = @transform_3, window_bounds = array<i64: 2, 16, 128>}, {transform_indices = @transform_4, window_bounds = array<i64: 2, 16, 128>}, {transform_indices = @transform_5, window_bounds = array<i64: 2, 16, 128>}, {transform_indices = @transform_6, window_bounds = array<i64: 2, 16, 128>}, {transform_indices = @transform_7, window_bounds = array<i64: 2, 16, 128>}]} {
    %c0 = arith.constant 0 : index
    %0 = memref.load %arg1[%c0] : memref<1xf32, #tpu.memory_space<smem>>
    %cst = arith.constant 9.800000e+00 : f32
    %1 = arith.mulf %cst, %0 : f32
    %cst_0 = arith.constant 2.450000e-02 : f32
    %2 = arith.mulf %cst_0, %0 : f32
    %cst_1 = arith.constant 1.000000e+00 : f32
    %3 = arith.mulf %0, %cst_1 : f32
    %4 = tpu.iota {dimensions = array<i32: 1>} : vector<16x128xi32>
    %5 = tpu.iota {dimensions = array<i32: 0>} : vector<16x128xi32>
    %c23_i32 = arith.constant 23 : i32
    %6 = vector.broadcast %c23_i32 : i32 to vector<16x128xi32>
    %7 = arith.cmpi slt, %4, %6 : vector<16x128xi32>
    %c15_i32 = arith.constant 15 : i32
    %8 = vector.broadcast %c15_i32 : i32 to vector<16x128xi32>
    %9 = arith.cmpi slt, %5, %8 : vector<16x128xi32>
    %c0_i32 = arith.constant 0 : i32
    %c2_i32 = arith.constant 2 : i32
    %10 = arith.addi %c0_i32, %c2_i32 : i32
    %c1_i32 = arith.constant 1 : i32
    scf.for %arg9 = %c0_i32 to %10 step %c1_i32  : i32 {
      %11 = arith.index_cast %arg9 : i32 to index
      %c0_3 = arith.constant 0 : index
      %c0_4 = arith.constant 0 : index
      %12 = vector.load %arg2[%11, %c0_3, %c0_4] : memref<2x16x128xf32, #tpu.memory_space<vmem>>, vector<1x16x128xf32>
      %13 = vector.shape_cast %12 : vector<1x16x128xf32> to vector<16x128xf32>
      %14 = arith.index_cast %arg9 : i32 to index
      %c0_5 = arith.constant 0 : index
      %c0_6 = arith.constant 0 : index
      %15 = vector.load %arg3[%14, %c0_5, %c0_6] : memref<2x16x128xf32, #tpu.memory_space<vmem>>, vector<1x16x128xf32>
      %16 = vector.shape_cast %15 : vector<1x16x128xf32> to vector<16x128xf32>
      %17 = arith.index_cast %arg9 : i32 to index
      %c0_7 = arith.constant 0 : index
      %c0_8 = arith.constant 0 : index
      %18 = vector.load %arg4[%17, %c0_7, %c0_8] : memref<2x16x128xf32, #tpu.memory_space<vmem>>, vector<1x16x128xf32>
      %19 = vector.shape_cast %18 : vector<1x16x128xf32> to vector<16x128xf32>
      %20 = arith.index_cast %arg9 : i32 to index
      %c0_9 = arith.constant 0 : index
      %c0_10 = arith.constant 0 : index
      %21 = vector.load %arg5[%20, %c0_9, %c0_10] : memref<2x16x128xf32, #tpu.memory_space<vmem>>, vector<1x16x128xf32>
      %22 = vector.shape_cast %21 : vector<1x16x128xf32> to vector<16x128xf32>
      %23 = arith.addf %16, %13 : vector<16x128xf32>
      %c127_i32 = arith.constant 127 : i32
      %24 = tpu.dynamic_rotate %23 by %c127_i32 dim 1 : vector<16x128xf32>, i32 -> vector<16x128xf32>
      %c127_i32_11 = arith.constant 127 : i32
      %25 = tpu.dynamic_rotate %13 by %c127_i32_11 dim 1 : vector<16x128xf32>, i32 -> vector<16x128xf32>
      %26 = arith.maximumf %24, %23 : vector<16x128xf32>
      %27 = arith.maximumf %25, %13 : vector<16x128xf32>
      %28 = arith.subf %26, %27 : vector<16x128xf32>
      %cst_12 = arith.constant 1.000000e-07 : f32
      %29 = vector.broadcast %cst_12 : f32 to vector<16x128xf32>
      %30 = arith.maximumf %28, %29 : vector<16x128xf32>
      %c15_i32_13 = arith.constant 15 : i32
      %31 = tpu.dynamic_rotate %23 by %c15_i32_13 dim 0 : vector<16x128xf32>, i32 -> vector<16x128xf32>
      %c15_i32_14 = arith.constant 15 : i32
      %32 = tpu.dynamic_rotate %13 by %c15_i32_14 dim 0 : vector<16x128xf32>, i32 -> vector<16x128xf32>
      %33 = arith.maximumf %31, %23 : vector<16x128xf32>
      %34 = arith.maximumf %32, %13 : vector<16x128xf32>
      %35 = arith.subf %33, %34 : vector<16x128xf32>
      %cst_15 = arith.constant 1.000000e-07 : f32
      %36 = vector.broadcast %cst_15 : f32 to vector<16x128xf32>
      %37 = arith.maximumf %35, %36 : vector<16x128xf32>
      %c127_i32_16 = arith.constant 127 : i32
      %38 = tpu.dynamic_rotate %22 by %c127_i32_16 dim 1 : vector<16x128xf32>, i32 -> vector<16x128xf32>
      %39 = arith.addf %22, %38 : vector<16x128xf32>
      %c1_i32_17 = arith.constant 1 : i32
      %40 = tpu.dynamic_rotate %39 by %c1_i32_17 dim 0 : vector<16x128xf32>, i32 -> vector<16x128xf32>
      %41 = arith.addf %39, %40 : vector<16x128xf32>
      %cst_18 = arith.constant 2.500000e-01 : f32
      %42 = vector.broadcast %cst_18 : f32 to vector<16x128xf32>
      %43 = arith.mulf %42, %41 : vector<16x128xf32>
      %44 = arith.mulf %19, %19 : vector<16x128xf32>
      %45 = arith.mulf %43, %43 : vector<16x128xf32>
      %46 = arith.addf %44, %45 : vector<16x128xf32>
      %cst_19 = arith.constant 9.99999993E-9 : f32
      %47 = vector.broadcast %cst_19 : f32 to vector<16x128xf32>
      %48 = arith.addf %46, %47 : vector<16x128xf32>
      %49 = math.sqrt %48 : vector<16x128xf32>
      %c15_i32_20 = arith.constant 15 : i32
      %50 = tpu.dynamic_rotate %19 by %c15_i32_20 dim 0 : vector<16x128xf32>, i32 -> vector<16x128xf32>
      %51 = arith.addf %19, %50 : vector<16x128xf32>
      %c1_i32_21 = arith.constant 1 : i32
      %52 = tpu.dynamic_rotate %51 by %c1_i32_21 dim 1 : vector<16x128xf32>, i32 -> vector<16x128xf32>
      %53 = arith.addf %51, %52 : vector<16x128xf32>
      %cst_22 = arith.constant 2.500000e-01 : f32
      %54 = vector.broadcast %cst_22 : f32 to vector<16x128xf32>
      %55 = arith.mulf %54, %53 : vector<16x128xf32>
      %56 = arith.mulf %22, %22 : vector<16x128xf32>
      %57 = arith.mulf %55, %55 : vector<16x128xf32>
      %58 = arith.addf %56, %57 : vector<16x128xf32>
      %cst_23 = arith.constant 9.99999993E-9 : f32
      %59 = vector.broadcast %cst_23 : f32 to vector<16x128xf32>
      %60 = arith.addf %58, %59 : vector<16x128xf32>
      %61 = math.sqrt %60 : vector<16x128xf32>
      %62 = math.log %30 : vector<16x128xf32>
      %cst_24 = arith.constant -2.33333325 : f32
      %63 = vector.broadcast %cst_24 : f32 to vector<16x128xf32>
      %64 = arith.mulf %62, %63 : vector<16x128xf32>
      %65 = math.exp %64 : vector<16x128xf32>
      %66 = math.log %37 : vector<16x128xf32>
      %cst_25 = arith.constant -2.33333325 : f32
      %67 = vector.broadcast %cst_25 : f32 to vector<16x128xf32>
      %68 = arith.mulf %66, %67 : vector<16x128xf32>
      %69 = math.exp %68 : vector<16x128xf32>
      %70 = vector.broadcast %1 : f32 to vector<16x128xf32>
      %71 = arith.mulf %70, %30 : vector<16x128xf32>
      %72 = arith.subf %24, %23 : vector<16x128xf32>
      %73 = arith.mulf %71, %72 : vector<16x128xf32>
      %74 = arith.subf %19, %73 : vector<16x128xf32>
      %75 = vector.broadcast %1 : f32 to vector<16x128xf32>
      %76 = arith.mulf %75, %37 : vector<16x128xf32>
      %77 = arith.subf %31, %23 : vector<16x128xf32>
      %78 = arith.mulf %76, %77 : vector<16x128xf32>
      %79 = arith.subf %22, %78 : vector<16x128xf32>
      %80 = vector.broadcast %2 : f32 to vector<16x128xf32>
      %81 = arith.mulf %80, %49 : vector<16x128xf32>
      %82 = arith.mulf %81, %65 : vector<16x128xf32>
      %cst_26 = arith.constant 1.000000e+00 : f32
      %83 = vector.broadcast %cst_26 : f32 to vector<16x128xf32>
      %84 = arith.addf %83, %82 : vector<16x128xf32>
      %85 = vector.broadcast %2 : f32 to vector<16x128xf32>
      %86 = arith.mulf %85, %61 : vector<16x128xf32>
      %87 = arith.mulf %86, %69 : vector<16x128xf32>
      %cst_27 = arith.constant 1.000000e+00 : f32
      %88 = vector.broadcast %cst_27 : f32 to vector<16x128xf32>
      %89 = arith.addf %88, %87 : vector<16x128xf32>
      %90 = tpu.reciprocal %84 {approx = true} : vector<16x128xf32> -> vector<16x128xf32>
      %91 = arith.mulf %84, %90 : vector<16x128xf32>
      %cst_28 = arith.constant 2.000000e+00 : f32
      %92 = vector.broadcast %cst_28 : f32 to vector<16x128xf32>
      %93 = arith.subf %92, %91 : vector<16x128xf32>
      %94 = arith.mulf %90, %93 : vector<16x128xf32>
      %95 = arith.mulf %74, %94 : vector<16x128xf32>
      %cst_29 = arith.constant 0.000000e+00 : f32
      %96 = vector.broadcast %cst_29 : f32 to vector<16x128xf32>
      %97 = arith.select %7, %95, %96 : vector<16x128xi1>, vector<16x128xf32>
      %98 = tpu.reciprocal %89 {approx = true} : vector<16x128xf32> -> vector<16x128xf32>
      %99 = arith.mulf %89, %98 : vector<16x128xf32>
      %cst_30 = arith.constant 2.000000e+00 : f32
      %100 = vector.broadcast %cst_30 : f32 to vector<16x128xf32>
      %101 = arith.subf %100, %99 : vector<16x128xf32>
      %102 = arith.mulf %98, %101 : vector<16x128xf32>
      %103 = arith.mulf %79, %102 : vector<16x128xf32>
      %cst_31 = arith.constant 0.000000e+00 : f32
      %104 = vector.broadcast %cst_31 : f32 to vector<16x128xf32>
      %105 = arith.select %9, %103, %104 : vector<16x128xi1>, vector<16x128xf32>
      %c1_i32_32 = arith.constant 1 : i32
      %106 = tpu.dynamic_rotate %97 by %c1_i32_32 dim 1 : vector<16x128xf32>, i32 -> vector<16x128xf32>
      %107 = arith.subf %106, %97 : vector<16x128xf32>
      %c1_i32_33 = arith.constant 1 : i32
      %108 = tpu.dynamic_rotate %105 by %c1_i32_33 dim 0 : vector<16x128xf32>, i32 -> vector<16x128xf32>
      %109 = arith.subf %108, %105 : vector<16x128xf32>
      %110 = arith.addf %107, %109 : vector<16x128xf32>
      %111 = vector.broadcast %3 : f32 to vector<16x128xf32>
      %112 = arith.mulf %111, %110 : vector<16x128xf32>
      %113 = arith.addf %16, %112 : vector<16x128xf32>
      %114 = arith.index_cast %arg9 : i32 to index
      %c0_34 = arith.constant 0 : index
      %c0_35 = arith.constant 0 : index
      %115 = vector.load %arg6[%114, %c0_34, %c0_35] : memref<2x16x128xf32, #tpu.memory_space<vmem>>, vector<1x16x128xf32>
      %116 = vector.shape_cast %115 : vector<1x16x128xf32> to vector<16x128xf32>
      %117 = vector.shape_cast %113 : vector<16x128xf32> to vector<1x16x128xf32>
      tpu.vector_store %arg6[%114, %c0_34, %c0_35], %117 {strides = array<i32>} : memref<2x16x128xf32, #tpu.memory_space<vmem>>, vector<1x16x128xf32>,
      %118 = arith.index_cast %arg9 : i32 to index
      %c0_36 = arith.constant 0 : index
      %c0_37 = arith.constant 0 : index
      %119 = vector.load %arg7[%118, %c0_36, %c0_37] : memref<2x16x128xf32, #tpu.memory_space<vmem>>, vector<1x16x128xf32>
      %120 = vector.shape_cast %119 : vector<1x16x128xf32> to vector<16x128xf32>
      %121 = vector.shape_cast %97 : vector<16x128xf32> to vector<1x16x128xf32>
      tpu.vector_store %arg7[%118, %c0_36, %c0_37], %121 {strides = array<i32>} : memref<2x16x128xf32, #tpu.memory_space<vmem>>, vector<1x16x128xf32>,
      %122 = arith.index_cast %arg9 : i32 to index
      %c0_38 = arith.constant 0 : index
      %c0_39 = arith.constant 0 : index
      %123 = vector.load %arg8[%122, %c0_38, %c0_39] : memref<2x16x128xf32, #tpu.memory_space<vmem>>, vector<1x16x128xf32>
      %124 = vector.shape_cast %123 : vector<1x16x128xf32> to vector<16x128xf32>
      %125 = vector.shape_cast %105 : vector<16x128xf32> to vector<1x16x128xf32>
      tpu.vector_store %arg8[%122, %c0_38, %c0_39], %125 {strides = array<i32>} : memref<2x16x128xf32, #tpu.memory_space<vmem>>, vector<1x16x128xf32>,
    }
    %c2_i32_2 = arith.constant 2 : i32
    return
  }
  func.func @transform_0(%arg0: i32) -> i32 {
    %c0_i32 = arith.constant 0 : i32
    %c0_i32_0 = arith.constant 0 : i32
    return %c0_i32 : i32
  }
  func.func @transform_1(%arg0: i32) -> (i32, i32, i32) {
    %c0_i32 = arith.constant 0 : i32
    %c0_i32_0 = arith.constant 0 : i32
    %c0_i32_1 = arith.constant 0 : i32
    return %arg0, %c0_i32, %c0_i32_0 : i32, i32, i32
  }
  func.func @transform_2(%arg0: i32) -> (i32, i32, i32) {
    %c0_i32 = arith.constant 0 : i32
    %c0_i32_0 = arith.constant 0 : i32
    %c0_i32_1 = arith.constant 0 : i32
    return %arg0, %c0_i32, %c0_i32_0 : i32, i32, i32
  }
  func.func @transform_3(%arg0: i32) -> (i32, i32, i32) {
    %c0_i32 = arith.constant 0 : i32
    %c0_i32_0 = arith.constant 0 : i32
    %c0_i32_1 = arith.constant 0 : i32
    return %arg0, %c0_i32, %c0_i32_0 : i32, i32, i32
  }
  func.func @transform_4(%arg0: i32) -> (i32, i32, i32) {
    %c0_i32 = arith.constant 0 : i32
    %c0_i32_0 = arith.constant 0 : i32
    %c0_i32_1 = arith.constant 0 : i32
    return %arg0, %c0_i32, %c0_i32_0 : i32, i32, i32
  }
  func.func @transform_5(%arg0: i32) -> (i32, i32, i32) {
    %c0_i32 = arith.constant 0 : i32
    %c0_i32_0 = arith.constant 0 : i32
    %c0_i32_1 = arith.constant 0 : i32
    return %arg0, %c0_i32, %c0_i32_0 : i32, i32, i32
  }
  func.func @transform_6(%arg0: i32) -> (i32, i32, i32) {
    %c0_i32 = arith.constant 0 : i32
    %c0_i32_0 = arith.constant 0 : i32
    %c0_i32_1 = arith.constant 0 : i32
    return %arg0, %c0_i32, %c0_i32_0 : i32, i32, i32
  }
  func.func @transform_7(%arg0: i32) -> (i32, i32, i32) {
    %c0_i32 = arith.constant 0 : i32
    %c0_i32_0 = arith.constant 0 : i32
    %c0_i32_1 = arith.constant 0 : i32
    return %arg0, %c0_i32, %c0_i32_0 : i32, i32, i32
  }
}

</mosaic_0001>

<llo_original>
// kernel: step.1
$region0: #{step.1}
  #allocation0 [shape = 'u32[]', space=smem, size = 0x4, offset = 0x4, fixed_abs, tag = 'smem constant byte address 0x4 - core index']
  #allocation1 [shape = 'u32[144,128]{1,0:T(1,128)}', space=vmem, size = 0x12000, scoped, tag = 'internal scratch']
  #allocation2 [shape = 'f32[1]{0:T(128)S(6)}', space=smem, size = 0x200, scoped, tag = 'scoped memory for step.1']
  %s0 = inlined_call_operand.<no memory space> [shape: f32[1], index: 0, kind: input, shape index: {}]
  %s1 = inlined_call_operand.vmem [shape: f32[2,16,128], index: 1, kind: input, shape index: {}]
  %s2 = inlined_call_operand.hbm [shape: f32[2,16,128], index: 2, kind: input, shape index: {}, may-alias: {2,5}]
  %s3 = inlined_call_operand.hbm [shape: f32[2,16,128], index: 3, kind: input, shape index: {}, may-alias: {3,6}]
  %s4 = inlined_call_operand.hbm [shape: f32[2,16,128], index: 4, kind: input, shape index: {}, may-alias: {4,7}]
  %s5 = inlined_call_operand.hbm [shape: f32[2,16,128], index: 5, kind: output, shape index: {0}, may-alias: {2,5}]
  %s6 = inlined_call_operand.hbm [shape: f32[2,16,128], index: 6, kind: output, shape index: {1}, may-alias: {3,6}]
  %s7 = inlined_call_operand.hbm [shape: f32[2,16,128], index: 7, kind: output, shape index: {2}, may-alias: {4,7}]
  %8 = xla_tuple %s5, %s6, %s7
  %s9 = sld [smem:[#allocation0]]
  $region65: #{step.1} parent=0
    _
  %s11 = ssub.s32 1, %s9
  %s12 = scalar_select 0, %s11, %s9
  %13 = sst [smem:[#allocation2]] %s0
  $region1: #{step.1} parent=0
    #allocation3 [shape = 'u8[16384]{0}', space=vmem, size = 0x4000, scoped, tag = 'input window, operand 2, single buffered']
    #allocation4 [shape = 's32[1]{0}', space=sflag, size = 0x4, scoped, tag = 'scoped memory for step.1']
    #allocation5 [shape = 's32[1]{0}', space=sflag, size = 0x4, scoped, tag = 'scoped memory for step.1']
    #allocation6 [shape = 'u8[16384]{0}', space=vmem, size = 0x4000, scoped, tag = 'input window, operand 3, single buffered']
    #allocation7 [shape = 's32[1]{0}', space=sflag, size = 0x4, scoped, tag = 'scoped memory for step.1']
    #allocation8 [shape = 'u8[16384]{0}', space=vmem, size = 0x4000, scoped, tag = 'input window, operand 4, single buffered']
    #allocation9 [shape = 'u8[16384]{0}', space=vmem, size = 0x4000, scoped, tag = 'output window, operand 0, single buffered']
    #allocation10 [shape = 'u8[16384]{0}', space=vmem, size = 0x4000, scoped, tag = 'output window, operand 1, single buffered']
    #allocation11 [shape = 's32[1]{0}', space=sflag, size = 0x4, scoped, tag = 'scoped memory for step.1']
    #allocation12 [shape = 'u8[16384]{0}', space=vmem, size = 0x4000, scoped, tag = 'output window, operand 2, single buffered']
    %14 = vsyncpa [#allocation4], 0
    %15 = vsyncpa [#allocation7], 0
    %16 = vsyncpa [#allocation5], 0
    %17 = vsyncpa [#allocation11], 0
    // Predicated region
    $region2: #{step.1} parent=1 // pred_check
      _
    $region3: #{step.1} parent=1 // pred_check_branch
      %19 = sbr.rel (0) target = $region5
    $region4: #{step.1} parent=1 // pred_region
      _
    $region5: #{step.1} parent=1 // pred_fallthru
      _
    // Predicated region
    $region6: #{step.1} parent=1 // pred_check
      _
    $region7: #{step.1} parent=1 // pred_check_branch
      %21 = sbr.rel (0) target = $region9
    $region8: #{step.1} parent=1 // pred_region
      _
    $region9: #{step.1} parent=1 // pred_fallthru
      _
    // Predicated region
    $region10: #{step.1} parent=1 // pred_check
      _
    $region11: #{step.1} parent=1 // pred_check_branch
      %23 = sbr.rel (0) target = $region13
    $region12: #{step.1} parent=1 // pred_region
      %s25 = ssub.s32 512, 512
      %26 = vsyncadd [#allocation4], %s25
      %s27 = sshll.u32 [#allocation3], 4
      %s28 = int_to_ptr.vmem [resolvable:$true] %s27
      %33 = dma.hbm_to_vmem [thread:$0]  %s2, 512, %s28, [#allocation4], 128, 128, 8
    $region13: #{step.1} parent=1 // pred_fallthru
      _
    // Predicated region
    $region14: #{step.1} parent=1 // pred_check
      _
    $region15: #{step.1} parent=1 // pred_check_branch
      %35 = sbr.rel (0) target = $region17
    $region16: #{step.1} parent=1 // pred_region
      %s37 = ssub.s32 512, 512
      %38 = vsyncadd [#allocation7], %s37
      %s39 = sshll.u32 [#allocation6], 4
      %s40 = int_to_ptr.vmem [resolvable:$true] %s39
      %45 = dma.hbm_to_vmem [thread:$0]  %s3, 512, %s40, [#allocation7], 128, 128, 8
    $region17: #{step.1} parent=1 // pred_fallthru
      _
    // Predicated region
    $region18: #{step.1} parent=1 // pred_check
      _
    $region19: #{step.1} parent=1 // pred_check_branch
      %47 = sbr.rel (0) target = $region21
    $region20: #{step.1} parent=1 // pred_region
      %s49 = ssub.s32 512, 512
      %50 = vsyncadd [#allocation7], %s49
      %s51 = sshll.u32 [#allocation8], 4
      %s52 = int_to_ptr.vmem [resolvable:$true] %s51
      %57 = dma.hbm_to_vmem [thread:$0]  %s4, 512, %s52, [#allocation7], 128, 128, 8
    $region21: #{step.1} parent=1 // pred_fallthru
      _
    // Predicated region
    $region22: #{step.1} parent=1 // pred_check
      _
    $region23: #{step.1} parent=1 // pred_check_branch
      %59 = sbr.rel (0) target = $region25
    $region24: #{step.1} parent=1 // pred_region
      %60 = dma.done [#allocation4], 512
    $region25: #{step.1} parent=1 // pred_fallthru
      _
    // Predicated region
    $region26: #{step.1} parent=1 // pred_check
      _
    $region27: #{step.1} parent=1 // pred_check_branch
      %62 = sbr.rel (0) target = $region29
    $region28: #{step.1} parent=1 // pred_region
      %63 = dma.done [#allocation7], 512
    $region29: #{step.1} parent=1 // pred_fallthru
      _
    // Predicated region
    $region30: #{step.1} parent=1 // pred_check
      _
    $region31: #{step.1} parent=1 // pred_check_branch
      %65 = sbr.rel (0) target = $region33
    $region32: #{step.1} parent=1 // pred_region
      %66 = dma.done [#allocation7], 512
    $region33: #{step.1} parent=1 // pred_fallthru
      _
    %s67 = sld [smem:[#allocation2]]
    %s68 = smul.f32 %s67, 9.8
    %s69 = smul.f32 %s67, 0.0245
    %v70 = vlaneseq
    %v71 = vand.u32 %v70, 127
    %v72 = vlaneseq
    %v73 = vshrl.u32 %v72, 7
    %v74 = vadd.s32 %v73, 8
    %vm75 = vcmp.lt.s32.totalorder %v71, 23
    %vm76 = vcmp.lt.s32.totalorder %v73, 15
    %vm77 = vcmp.lt.s32.totalorder %v74, 15
    loop: start=0, step=1, limit=2
    $region34: #{step.1} parent=1 // loop_pre_header
      _
    $region35: #{step.1} parent=1 // loop_header
      %s79 = sphi 0, %s83
      %p80 = scmp.ge.s32.totalorder %s79, 2
    $region36: #{step.1} parent=1 // loop_header_branch
      %82 = sbr.rel (%p80) target = $region40
    $region37: #{step.1} parent=1 // loop_body
      %s84 = smul.u32 %s79, 16
      %s85 = scalar_lea.vmem %s1, %s84
      %v86 = vld [vmem:[%s85] sm:$0xff]
      %v87 = vld [vmem:[%s85 + $0x8] sm:$0xff]
      %s88 = scalar_lea.vmem [#allocation3], %s84
      %v89 = vld [vmem:[%s88] sm:$0xff]
      %v90 = vld [vmem:[%s88 + $0x8] sm:$0xff]
      %s91 = scalar_lea.vmem [#allocation6], %s84
      %v92 = vld [vmem:[%s91] sm:$0xff]
      %v93 = vld [vmem:[%s91 + $0x8] sm:$0xff]
      %s94 = scalar_lea.vmem [#allocation8], %s84
      %v95 = vld [vmem:[%s94] sm:$0xff]
      %v96 = vld [vmem:[%s94 + $0x8] sm:$0xff]
      %v97 = vadd.f32 %v89, %v86
      %v98 = vadd.f32 %v90, %v87
      %99 = vrot.lane.b32.xlu0 %v97, 127
      %v100 = vpop.permute.xlu0 %99
      %101 = vrot.lane.b32.xlu0 %v98, 127
      %v102 = vpop.permute.xlu0 %101
      %103 = vrot.lane.b32.xlu0 %v86, 127
      %v104 = vpop.permute.xlu0 %103
      %105 = vrot.lane.b32.xlu0 %v87, 127
      %v106 = vpop.permute.xlu0 %105
      %v107 = vmax.f32 %v100, %v97
      %v108 = vmax.f32 %v102, %v98
      %v109 = vmax.f32 %v104, %v86
      %v110 = vmax.f32 %v106, %v87
      %v111 = vsub.f32 %v107, %v109
      %v112 = vsub.f32 %v108, %v110
      %v113 = vmax.f32 %v111, 1e-07
      %v114 = vmax.f32 %v112, 1e-07
      %v115 = vrot.slane %v97, 1
      %v116 = vrot.slane %v98, 1
      %vm117 = vcmp.lt.s32.totalorder %v73, 7
      %v118 = vsel %vm117, %v115, %v116
      %v119 = vsel %vm117, %v116, %v115
      %v120 = vrot.slane %v86, 1
      %v121 = vrot.slane %v87, 1
      %v122 = vsel %vm117, %v120, %v121
      %v123 = vsel %vm117, %v121, %v120
      %v124 = vmax.f32 %v118, %v97
      %v125 = vmax.f32 %v119, %v98
      %v126 = vmax.f32 %v122, %v86
      %v127 = vmax.f32 %v123, %v87
      %v128 = vsub.f32 %v124, %v126
      %v129 = vsub.f32 %v125, %v127
      %v130 = vmax.f32 %v128, 1e-07
      %v131 = vmax.f32 %v129, 1e-07
      %132 = vrot.lane.b32.xlu0 %v95, 127
      %v133 = vpop.permute.xlu0 %132
      %134 = vrot.lane.b32.xlu0 %v96, 127
      %v135 = vpop.permute.xlu0 %134
      %v136 = vadd.f32 %v95, %v133
      %v137 = vadd.f32 %v96, %v135
      %v138 = vrot.slane %v136, 7
      %v139 = vrot.slane %v137, 7
      %vm140 = vcmp.lt.s32.totalorder %v73, 1
      %v141 = vsel %vm140, %v138, %v139
      %v142 = vsel %vm140, %v139, %v138
      %v143 = vadd.f32 %v136, %v142
      %v144 = vadd.f32 %v137, %v141
      %v145 = vmul.f32 %v143, 0.25
      %v146 = vmul.f32 %v144, 0.25
      %v147 = vmul.f32 %v92, %v92
      %v148 = vmul.f32 %v93, %v93
      %v149 = vmul.f32 %v145, %v145
      %v150 = vmul.f32 %v146, %v146
      %v151 = vadd.f32 %v147, %v149
      %v152 = vadd.f32 %v148, %v150
      %v153 = vadd.f32 %v151, 1e-08
      %v154 = vadd.f32 %v152, 1e-08
      %v155 = vrsqrt.pop %v153
      %v156 = vmul.f32 %v153, %v155
      %vm157 = vcmp.eq.f32.partialorder %v153, inf
      %v158 = vsel %vm157, %v153, %v156
      %vm159 = vcmp.eq.f32.partialorder %v153, 0.0
      %v160 = vand.u32 %v153, 2147483648
      %v161 = vsel %vm159, %v160, %v158
      %v162 = vrsqrt.pop %v154
      %v163 = vmul.f32 %v154, %v162
      %vm164 = vcmp.eq.f32.partialorder %v154, inf
      %v165 = vsel %vm164, %v154, %v163
      %vm166 = vcmp.eq.f32.partialorder %v154, 0.0
      %v167 = vand.u32 %v154, 2147483648
      %v168 = vsel %vm166, %v167, %v165
      %v169 = vrot.slane %v92, 1
      %v170 = vrot.slane %v93, 1
      %v171 = vsel %vm117, %v169, %v170
      %v172 = vsel %vm117, %v170, %v169
      %v173 = vadd.f32 %v92, %v171
      %v174 = vadd.f32 %v93, %v172
      %175 = vrot.lane.b32.xlu0 %v173, 1
      %v176 = vpop.permute.xlu0 %175
      %177 = vrot.lane.b32.xlu0 %v174, 1
      %v178 = vpop.permute.xlu0 %177
      %v179 = vadd.f32 %v173, %v176
      %v180 = vadd.f32 %v174, %v178
      %v181 = vmul.f32 %v179, 0.25
      %v182 = vmul.f32 %v180, 0.25
      %v183 = vmul.f32 %v95, %v95
      %v184 = vmul.f32 %v96, %v96
      %v185 = vmul.f32 %v181, %v181
      %v186 = vmul.f32 %v182, %v182
      %v187 = vadd.f32 %v183, %v185
      %v188 = vadd.f32 %v184, %v186
      %v189 = vadd.f32 %v187, 1e-08
      %v190 = vadd.f32 %v188, 1e-08
      %v191 = vrsqrt.pop %v189
      %v192 = vmul.f32 %v189, %v191
      %vm193 = vcmp.eq.f32.partialorder %v189, inf
      %v194 = vsel %vm193, %v189, %v192
      %vm195 = vcmp.eq.f32.partialorder %v189, 0.0
      %v196 = vand.u32 %v189, 2147483648
      %v197 = vsel %vm195, %v196, %v194
      %v198 = vrsqrt.pop %v190
      %v199 = vmul.f32 %v190, %v198
      %vm200 = vcmp.eq.f32.partialorder %v190, inf
      %v201 = vsel %vm200, %v190, %v199
      %vm202 = vcmp.eq.f32.partialorder %v190, 0.0
      %v203 = vand.u32 %v190, 2147483648
      %v204 = vsel %vm202, %v203, %v201
      %v205 = vlog2.pop %v113
      %v206 = vmul.f32 %v205, 0.6931472
      %v207 = vlog2.pop %v114
      %v208 = vmul.f32 %v207, 0.6931472
      %v209 = vmul.f32 %v206, -2.3333333
      %v210 = vmul.f32 %v208, -2.3333333
      %v211 = vmul.f32 %v209, 1.442695
      %v212 = vpow.pop %v211
      %v213 = vmul.f32 %v210, 1.442695
      %v214 = vpow.pop %v213
      %v215 = vlog2.pop %v130
      %v216 = vmul.f32 %v215, 0.6931472
      %v217 = vlog2.pop %v131
      %v218 = vmul.f32 %v217, 0.6931472
      %v219 = vmul.f32 %v216, -2.3333333
      %v220 = vmul.f32 %v218, -2.3333333
      %v221 = vmul.f32 %v219, 1.442695
      %v222 = vpow.pop %v221
      %v223 = vmul.f32 %v220, 1.442695
      %v224 = vpow.pop %v223
      %v225 = vstv %s68
      %v226 = vmul.f32 %v225, %v113
      %v227 = vmul.f32 %v225, %v114
      %v228 = vsub.f32 %v100, %v97
      %v229 = vsub.f32 %v102, %v98
      %v230 = vmul.f32 %v226, %v228
      %v231 = vmul.f32 %v227, %v229
      %v232 = vsub.f32 %v92, %v230
      %v233 = vsub.f32 %v93, %v231
      %v234 = vmul.f32 %v225, %v130
      %v235 = vmul.f32 %v225, %v131
      %v236 = vsub.f32 %v118, %v97
      %v237 = vsub.f32 %v119, %v98
      %v238 = vmul.f32 %v234, %v236
      %v239 = vmul.f32 %v235, %v237
      %v240 = vsub.f32 %v95, %v238
      %v241 = vsub.f32 %v96, %v239
      %v242 = vstv %s69
      %v243 = vmul.f32 %v242, %v161
      %v244 = vmul.f32 %v242, %v168
      %v245 = vmul.f32 %v243, %v212
      %v246 = vmul.f32 %v244, %v214
      %v247 = vadd.f32 %v245, 1.0
      %v248 = vadd.f32 %v246, 1.0
      %v249 = vmul.f32 %v242, %v197
      %v250 = vmul.f32 %v242, %v204
      %v251 = vmul.f32 %v249, %v222
      %v252 = vmul.f32 %v250, %v224
      %v253 = vadd.f32 %v251, 1.0
      %v254 = vadd.f32 %v252, 1.0
      %v255 = vrcp.pop %v247
      %v256 = vrcp.pop %v248
      %v257 = vmul.f32 %v247, %v255
      %v258 = vmul.f32 %v248, %v256
      %v259 = vsub.f32 2.0, %v257
      %v260 = vsub.f32 2.0, %v258
      %v261 = vmul.f32 %v255, %v259
      %v262 = vmul.f32 %v256, %v260
      %v263 = vmul.f32 %v232, %v261
      %v264 = vmul.f32 %v233, %v262
      %v265 = vsel %vm75, %v263, 0.0
      %v266 = vsel %vm75, %v264, 0.0
      %v267 = vrcp.pop %v253
      %v268 = vrcp.pop %v254
      %v269 = vmul.f32 %v253, %v267
      %v270 = vmul.f32 %v254, %v268
      %v271 = vsub.f32 2.0, %v269
      %v272 = vsub.f32 2.0, %v270
      %v273 = vmul.f32 %v267, %v271
      %v274 = vmul.f32 %v268, %v272
      %v275 = vmul.f32 %v240, %v273
      %v276 = vmul.f32 %v241, %v274
      %v277 = vsel %vm76, %v275, 0.0
      %v278 = vsel %vm77, %v276, 0.0
      %279 = vrot.lane.b32.xlu0 %v265, 1
      %v280 = vpop.permute.xlu0 %279
      %281 = vrot.lane.b32.xlu0 %v266, 1
      %v282 = vpop.permute.xlu0 %281
      %v283 = vsub.f32 %v280, %v265
      %v284 = vsub.f32 %v282, %v266
      %v285 = vrot.slane %v277, 7
      %v286 = vrot.slane %v278, 7
      %v287 = vsel %vm140, %v285, %v286
      %v288 = vsel %vm140, %v286, %v285
      %v289 = vsub.f32 %v288, %v277
      %v290 = vsub.f32 %v287, %v278
      %v291 = vadd.f32 %v283, %v289
      %v292 = vadd.f32 %v284, %v290
      %v293 = vstv %s67
      %v294 = vmul.f32 %v293, %v291
      %v295 = vmul.f32 %v293, %v292
      %v296 = vadd.f32 %v89, %v294
      %v297 = vadd.f32 %v90, %v295
      %s298 = scalar_lea.vmem [#allocation9], %s84
      %299 = vst [vmem:[%s298] sm:$0xff] %v296
      %300 = vst [vmem:[%s298 + $0x8] sm:$0xff] %v297
      %s301 = scalar_lea.vmem [#allocation10], %s84
      %302 = vst [vmem:[%s301] sm:$0xff] %v265
      %303 = vst [vmem:[%s301 + $0x8] sm:$0xff] %v266
      %s304 = scalar_lea.vmem [#allocation12], %s84
      %305 = vst [vmem:[%s304] sm:$0xff] %v277
      %306 = vst [vmem:[%s304 + $0x8] sm:$0xff] %v278
    $region38: #{step.1} parent=1 // loop_footer
      %s83 = sadd.s32 1, %s79
    $region39: #{step.1} parent=1 // loop_footer_branch
      %78 = sbr.rel target = $region35
    $region40: #{step.1} parent=1 // loop_exit
      _
    // Predicated region
    $region41: #{step.1} parent=1 // pred_check
      _
    $region42: #{step.1} parent=1 // pred_check_branch
      %308 = sbr.rel (0) target = $region44
    $region43: #{step.1} parent=1 // pred_region
      %s310 = ssub.s32 512, 512
      %311 = vsyncadd [#allocation5], %s310
      %s312 = sshll.u32 [#allocation9], 4
      %s313 = int_to_ptr.vmem [resolvable:$true] %s312
      %318 = dma.vmem_to_hbm [thread:$0]  %s313, 512, %s5, [#allocation5], 128, 128, 8
    $region44: #{step.1} parent=1 // pred_fallthru
      _
    // Predicated region
    $region45: #{step.1} parent=1 // pred_check
      _
    $region46: #{step.1} parent=1 // pred_check_branch
      %320 = sbr.rel (0) target = $region48
    $region47: #{step.1} parent=1 // pred_region
      %s322 = ssub.s32 512, 512
      %323 = vsyncadd [#allocation11], %s322
      %s324 = sshll.u32 [#allocation10], 4
      %s325 = int_to_ptr.vmem [resolvable:$true] %s324
      %330 = dma.vmem_to_hbm [thread:$0]  %s325, 512, %s6, [#allocation11], 128, 128, 8
    $region48: #{step.1} parent=1 // pred_fallthru
      _
    // Predicated region
    $region49: #{step.1} parent=1 // pred_check
      _
    $region50: #{step.1} parent=1 // pred_check_branch
      %332 = sbr.rel (0) target = $region52
    $region51: #{step.1} parent=1 // pred_region
      %s334 = ssub.s32 512, 512
      %335 = vsyncadd [#allocation11], %s334
      %s336 = sshll.u32 [#allocation12], 4
      %s337 = int_to_ptr.vmem [resolvable:$true] %s336
      %342 = dma.vmem_to_hbm [thread:$0]  %s337, 512, %s7, [#allocation11], 128, 128, 8
    $region52: #{step.1} parent=1 // pred_fallthru
      _
    // Predicated region
    $region53: #{step.1} parent=1 // pred_check
      _
    $region54: #{step.1} parent=1 // pred_check_branch
      %344 = sbr.rel (0) target = $region56
    $region55: #{step.1} parent=1 // pred_region
      %345 = dma.done [#allocation5], 512
    $region56: #{step.1} parent=1 // pred_fallthru
      _
    // Predicated region
    $region57: #{step.1} parent=1 // pred_check
      _
    $region58: #{step.1} parent=1 // pred_check_branch
      %347 = sbr.rel (0) target = $region60
    $region59: #{step.1} parent=1 // pred_region
      %348 = dma.done [#allocation11], 512
    $region60: #{step.1} parent=1 // pred_fallthru
      _
    // Predicated region
    $region61: #{step.1} parent=1 // pred_check
      _
    $region62: #{step.1} parent=1 // pred_check_branch
      %350 = sbr.rel (0) target = $region64
    $region63: #{step.1} parent=1 // pred_region
      %351 = dma.done [#allocation11], 512
    $region64: #{step.1} parent=1 // pred_fallthru
      _
    %352 = vsyncpa [#allocation4], 1
    %353 = vsyncpa [#allocation7], 1
    %354 = vsyncpa [#allocation5], 1
    %355 = vsyncpa [#allocation11], 1

</llo_original>
